<compile_context>
chip_gen: v6e
topology: v6e:2x2x1
jax: 0.10.0
libtpu: 0.0.40
codegen_flags: <defaults>
</compile_context>

<pallas_src>
import numpy as np
import jax
import jax.numpy as jnp
from jax import lax
from jax.experimental import pallas as pl
from jax.experimental.pallas import tpu as pltpu


def _round_up(n, mult=8):
    return ((n + mult - 1) // mult) * mult


# --------------------------------------------------------------------------------------
# Shared forward math.  Called with Ref loads inside the Pallas kernel and with plain
# jnp arrays for the pure-JAX reference, so kernel and reference run the exact same ops.
# --------------------------------------------------------------------------------------
def _forward_math(x, sel, mask, wp, bp, *, T, W_pad, H, P, C, D_in,
                  off_wf, off_whh, off_w1, off_w2, num_graphs):
    f32 = jnp.float32
    G3 = 3 * H
    B_pad = mask.shape[0]

    # packed biases / affine params (one [8, 128] operand instead of six tiny DMAs)
    b_fused = bp[0:1, 0:G3]          # be @ Wih^T + bih   (encoder bias folded in)
    bhh = bp[1:2, 0:G3]              # GRU b_hh, gates r|z|n packed along lanes
    gamma = bp[2:3, 0:H]
    beta = bp[3:4, 0:H]
    b1 = bp[4:5, 0:P]
    b2 = bp[5:6, 0:C]

    # packed weights (one [rows, 128] slab; all row offsets are multiples of 8)
    w_fused = wp[off_wf:off_wf + D_in, 0:G3]     # [D_in, 3H]  encoder folded into W_ih
    whh = wp[off_whh:off_whh + H, 0:G3]          # [H, 3H]
    w1 = wp[off_w1:off_w1 + H, 0:P]              # [H, P]
    w2 = wp[off_w2:off_w2 + P, 0:C]              # [P, C]

    # ---- (1) fused Linear encoder + GRU input projection, per node (off serial path) --
    gi_nodes = jnp.dot(x, w_fused, preferred_element_type=f32) + b_fused     # [N_pad, 3H]

    # ---- (2) walk gather on the MXU: one-hot bf16 (exact 0/1) x bf16 -> f32 -----------
    gi_all = jnp.dot(sel, gi_nodes.astype(jnp.bfloat16),
                     preferred_element_type=f32)                             # [T*W_pad, 3H]

    # ---- (3) GRU recurrence: one packed h @ Whh per step; t = 0 peeled (h == 0) -------
    g0 = gi_all[0:W_pad, :]
    r = jax.nn.sigmoid(g0[:, 0:H] + bhh[:, 0:H])
    z = jax.nn.sigmoid(g0[:, H:2 * H] + bhh[:, H:2 * H])
    n = jnp.tanh(g0[:, 2 * H:G3] + r * bhh[:, 2 * H:G3])
    h = (1.0 - z) * n                                                        # [W_pad, H]
    for t in range(1, T):            # T = walk_length is small & static -> unrolled
        gt = gi_all[t * W_pad:(t + 1) * W_pad, :]
        gh = jnp.dot(h, whh, preferred_element_type=f32) + bhh               # [W_pad, 3H]
        r = jax.nn.sigmoid(gt[:, 0:H] + gh[:, 0:H])
        z = jax.nn.sigmoid(gt[:, H:2 * H] + gh[:, H:2 * H])
        n = jnp.tanh(gt[:, 2 * H:G3] + r * gh[:, 2 * H:G3])
        h = (1.0 - z) * n + z * h

    # ---- (4) per-graph mean of walk encodings (graphs w/o walks stay 0, as in PyTorch) -
    cnt = jnp.sum(mask, axis=1, keepdims=True)                               # [B_pad, 1]
    graph_enc = jnp.dot(mask, h, preferred_element_type=f32) / jnp.maximum(cnt, 1.0)

    # ---- (5) BatchNorm1d, training-mode batch stats (biased var, eps=1e-5) ------------
    #      padded batch rows (>= num_graphs) are excluded from the statistics.
    valid = (lax.broadcasted_iota(jnp.int32, (B_pad, 1), 0) < num_graphs).astype(f32)
    inv_b = 1.0 / float(num_graphs)
    mean = jnp.sum(graph_enc * valid, axis=0, keepdims=True) * inv_b
    diff = (graph_enc - mean) * valid
    var = jnp.sum(diff * diff, axis=0, keepdims=True) * inv_b
    bn = (graph_enc - mean) * lax.rsqrt(var + 1e-5) * gamma + beta

    # ---- (6) fc1 + ReLU, dropout(p=0) identity, fc2, log_softmax ----------------------
    h1 = jnp.maximum(jnp.dot(bn, w1, preferred_element_type=f32) + b1, 0.0)
    logits = jnp.dot(h1, w2, preferred_element_type=f32) + b2
    m = jnp.max(logits, axis=1, keepdims=True)
    lse = jnp.log(jnp.sum(jnp.exp(logits - m), axis=1, keepdims=True)) + m
    return logits - lse                                                      # [B_pad, C]


# ----------------------------- fused forward: single pallas_call -----------------------
def rw_gnn_forward_pallas(x_pad, sel, mask, wpack, bpack, *, dims, num_graphs):
    B_pad = mask.shape[0]
    C = dims["C"]

    def kernel(x_ref, sel_ref, mask_ref, w_ref, b_ref, o_ref):
        o_ref[...] = _forward_math(x_ref[...], sel_ref[...], mask_ref[...],
                                   w_ref[...], b_ref[...],
                                   num_graphs=num_graphs, **dims)

    vmem = pl.BlockSpec(memory_space=pltpu.MemorySpace.VMEM)
    out_pad = pl.pallas_call(
        kernel,
        out_shape=jax.ShapeDtypeStruct((B_pad, C), jnp.float32),
        in_specs=[vmem] * 5,
        out_specs=vmem,
        compiler_params=pltpu.CompilerParams(vmem_limit_bytes=32 * 1024 * 1024),
    )(x_pad, sel, mask, wpack, bpack)
    return out_pad[:num_graphs]


# --------------------------- host-side random walk sampling ----------------------------
# TODO(synk): torch_cluster.random_walk / to_undirected are data-dependent graph
# traversals with no clean Pallas equivalent; replicated deterministically on host.
def sample_random_walks_host(edges, batch, num_walks, walk_length, rng):
    N = batch.shape[0]
    adj = {i: set() for i in range(N)}
    for u, v in edges:  # treat as undirected
        adj[u].add(v)
        adj[v].add(u)
    walks, walk_batch = [], []
    n_graphs = int(batch.max()) + 1
    for g in range(n_graphs):
        nodes = np.nonzero(batch == g)[0]
        if nodes.size <= 1:
            continue
        if num_walks >= nodes.size:
            starts = nodes
        else:
            starts = nodes[rng.permutation(nodes.size)[:num_walks]]
        for s in starts:
            cur = int(s)
            walk = [cur]
            for _ in range(walk_length - 1):
                nbrs = sorted(adj[cur])
                if len(nbrs) > 0:
                    cur = int(nbrs[rng.randint(len(nbrs))])
                walk.append(cur)
            walks.append(walk)
            walk_batch.append(g)
    if len(walks) == 0:
        return (np.zeros((1, walk_length), np.int32), np.zeros((1,), np.int32))
    return (np.asarray(walks, dtype=np.int32), np.asarray(walk_batch, dtype=np.int32))


if __name__ == "__main__":
    # RW_GNN hyper-parameters (small, consistent with the module)
    input_dim = 8
    max_step = 3
    hidden_graphs = 8          # == num_walks per graph
    size_hidden_graphs = 5
    hidden_dim = 32
    penultimate_dim = 16
    num_classes = 3
    dropout_p = 0.0            # reference = train-mode forward with p=0 (BN batch stats,
    walk_length = max_step + 1 # dropout exactly identity)

    # synthetic 2-graph batch: graph 0 has 10 nodes, graph 1 has 12 nodes
    n0, n1 = 10, 12
    N = n0 + n1
    batch_np = np.concatenate([np.zeros(n0, np.int32), np.ones(n1, np.int32)])
    edges = []
    for i in range(n0):
        edges.append((i, (i + 1) % n0))
        edges.append((i, (i + 3) % n0))
    for i in range(n1):
        edges.append((n0 + i, n0 + (i + 1) % n1))
        edges.append((n0 + i, n0 + (i + 5) % n1))

    rng = np.random.RandomState(0)
    walks_np, walk_batch_np = sample_random_walks_host(
        edges, batch_np, hidden_graphs, walk_length, rng)
    W_total = walks_np.shape[0]
    T = walk_length
    B = int(np.unique(batch_np).size)

    # ---------------- deterministic parameter init (shapes per __init__) ----------------
    key = jax.random.PRNGKey(0)
    ks = jax.random.split(key, 13)

    def uinit(k, shape, lim):
        return jax.random.uniform(k, shape, jnp.float32, -lim, lim)

    x = jax.random.normal(ks[0], (N, input_dim), jnp.float32)

    lim = 1.0 / np.sqrt(input_dim)
    We = uinit(ks[1], (hidden_dim, input_dim), lim)        # feature_encoder.weight
    be = uinit(ks[2], (hidden_dim,), lim)                  # feature_encoder.bias

    lim = 1.0 / np.sqrt(hidden_dim)
    Wih = uinit(ks[3], (3 * hidden_dim, hidden_dim), lim)  # GRU weight_ih_l0 (r,z,n)
    Whh = uinit(ks[4], (3 * hidden_dim, hidden_dim), lim)  # GRU weight_hh_l0
    bih = uinit(ks[5], (3 * hidden_dim,), lim)
    bhh = uinit(ks[6], (3 * hidden_dim,), lim)

    # adj_hidden / features_hidden are declared in RW_GNN.__init__ but unused in forward.

    lim = 1.0 / np.sqrt(hidden_dim)
    W1 = uinit(ks[9], (penultimate_dim, hidden_dim), lim)
    b1 = uinit(ks[10], (penultimate_dim,), lim)
    lim = 1.0 / np.sqrt(penultimate_dim)
    W2 = uinit(ks[11], (num_classes, penultimate_dim), lim)
    b2 = uinit(ks[12], (num_classes,), lim)

    # -------- host-side layout prep (one-time): fold encoder, lane-pack gates, pack ----
    H, P, C, D_in = hidden_dim, penultimate_dim, num_classes, input_dim
    G3 = 3 * H

    Wih_t = np.asarray(Wih).T                     # [H, 3H]   gates r|z|n along lanes
    Whh_t = np.asarray(Whh).T                     # [H, 3H]
    We_t = np.asarray(We).T                       # [D_in, H]
    W_fused = We_t @ Wih_t                        # [D_in, 3H]  encoder folded into W_ih
    b_fused = np.asarray(be) @ Wih_t + np.asarray(bih)   # [3H]

    D_in_pad = _round_up(D_in, 8)
    P_pad = _round_up(P, 8)
    off_wf = 0
    off_whh = off_wf + D_in_pad
    off_w1 = off_whh + H
    off_w2 = off_w1 + H
    wrows = off_w2 + P_pad                        # 88 rows (multiple of 8)

    wpack = np.zeros((wrows, 128), np.float32)    # one lane-dense weight slab
    wpack[off_wf:off_wf + D_in, 0:G3] = W_fused
    wpack[off_whh:off_whh + H, 0:G3] = Whh_t
    wpack[off_w1:off_w1 + H, 0:P] = np.asarray(W1).T
    wpack[off_w2:off_w2 + P, 0:C] = np.asarray(W2).T

    bpack = np.zeros((8, 128), np.float32)        # one slab for all biases / BN affine
    bpack[0, 0:G3] = b_fused
    bpack[1, 0:G3] = np.asarray(bhh)
    bpack[2, 0:H] = 1.0                           # bn.weight  (gamma)
    bpack[3, 0:H] = 0.0                           # bn.bias    (beta)
    bpack[4, 0:P] = np.asarray(b1)
    bpack[5, 0:C] = np.asarray(b2)

    # padded rows (multiples of 8 sublanes) + one-hot gather / membership matrices
    N_pad = _round_up(N, 8)
    W_pad = _round_up(W_total, 8)
    B_pad = _round_up(B, 8)

    x_pad = np.zeros((N_pad, D_in), np.float32)
    x_pad[:N] = np.asarray(x)

    # one-hot walk selection, time-major: row t*W_pad + w selects node walks[w, t]
    sel_np = np.zeros((T, W_pad, N_pad), np.float32)
    for w in range(W_total):
        for t in range(T):
            sel_np[t, w, int(walks_np[w, t])] = 1.0
    sel_np = sel_np.reshape(T * W_pad, N_pad)

    # per-graph walk membership for the segment-mean
    mask_np = np.zeros((B_pad, W_pad), np.float32)
    for w in range(W_total):
        mask_np[int(walk_batch_np[w]), w] = 1.0

    dims = dict(T=T, W_pad=W_pad, H=H, P=P, C=C, D_in=D_in,
                off_wf=off_wf, off_whh=off_whh, off_w1=off_w1, off_w2=off_w2)

    x_j = jnp.asarray(x_pad)
    sel_j = jnp.asarray(sel_np, dtype=jnp.bfloat16)   # 0/1 is exact in bf16
    mask_j = jnp.asarray(mask_np)
    wpack_j = jnp.asarray(wpack)
    bpack_j = jnp.asarray(bpack)

    # --------------------------------- fused forward pass ------------------------------
    log_probs = rw_gnn_forward_pallas(x_j, sel_j, mask_j, wpack_j, bpack_j,
                                      dims=dims, num_graphs=B)
    log_probs = jax.block_until_ready(log_probs)

    # --------------------------------- checks ------------------------------------------
    assert log_probs.shape == (B, num_classes)
    assert bool(jnp.all(jnp.isfinite(log_probs)))
    assert bool(jnp.allclose(jnp.sum(jnp.exp(log_probs), axis=1), 1.0, atol=1e-4))

    # pure-JAX reference (same math, outside Pallas) for correctness
    ref = _forward_math(x_j, sel_j, mask_j, wpack_j, bpack_j,
                        num_graphs=B, **dims)[:B]
    np.testing.assert_allclose(np.asarray(log_probs), np.asarray(ref),
                               rtol=1e-2, atol=1e-2)
    print("KERNEL_OK")
</pallas_src>

<mosaic_0001>
module attributes {stable_mosaic.version = 11 : i64} {
  func.func @kernel(%arg0: memref<24x8xf32, #tpu.memory_space<vmem>>, %arg1: memref<64x24xbf16, #tpu.memory_space<vmem>>, %arg2: memref<8x16xf32, #tpu.memory_space<vmem>>, %arg3: memref<88x128xf32, #tpu.memory_space<vmem>>, %arg4: memref<8x128xf32, #tpu.memory_space<vmem>>, %arg5: memref<8x3xf32, #tpu.memory_space<vmem>>) attributes {dimension_semantics = [], scalar_prefetch = 0 : i64, scratch_operands = 0 : i64, tpu.core_type = #tpu.core_type<tc>} {
    %c0 = arith.constant 0 : index
    %c0_0 = arith.constant 0 : index
    %0 = vector.load %arg0[%c0, %c0_0] : memref<24x8xf32, #tpu.memory_space<vmem>>, vector<24x8xf32>
    %c0_1 = arith.constant 0 : index
    %c0_2 = arith.constant 0 : index
    %1 = vector.load %arg1[%c0_1, %c0_2] : memref<64x24xbf16, #tpu.memory_space<vmem>>, vector<64x24xbf16>
    %c0_3 = arith.constant 0 : index
    %c0_4 = arith.constant 0 : index
    %2 = vector.load %arg2[%c0_3, %c0_4] : memref<8x16xf32, #tpu.memory_space<vmem>>, vector<8x16xf32>
    %c0_5 = arith.constant 0 : index
    %c0_6 = arith.constant 0 : index
    %3 = vector.load %arg3[%c0_5, %c0_6] : memref<88x128xf32, #tpu.memory_space<vmem>>, vector<88x128xf32>
    %c0_7 = arith.constant 0 : index
    %c0_8 = arith.constant 0 : index
    %4 = vector.load %arg4[%c0_7, %c0_8] : memref<8x128xf32, #tpu.memory_space<vmem>>, vector<8x128xf32>
    %5 = vector.extract_strided_slice %4 {offsets = [0, 0], sizes = [1, 96], strides = [1, 1]} : vector<8x128xf32> to vector<1x96xf32>
    %6 = vector.extract_strided_slice %4 {offsets = [1, 0], sizes = [1, 96], strides = [1, 1]} : vector<8x128xf32> to vector<1x96xf32>
    %7 = vector.extract_strided_slice %4 {offsets = [2, 0], sizes = [1, 32], strides = [1, 1]} : vector<8x128xf32> to vector<1x32xf32>
    %8 = vector.extract_strided_slice %4 {offsets = [3, 0], sizes = [1, 32], strides = [1, 1]} : vector<8x128xf32> to vector<1x32xf32>
    %9 = vector.extract_strided_slice %4 {offsets = [4, 0], sizes = [1, 16], strides = [1, 1]} : vector<8x128xf32> to vector<1x16xf32>
    %10 = vector.extract_strided_slice %4 {offsets = [5, 0], sizes = [1, 3], strides = [1, 1]} : vector<8x128xf32> to vector<1x3xf32>
    %11 = vector.extract_strided_slice %3 {offsets = [0, 0], sizes = [8, 96], strides = [1, 1]} : vector<88x128xf32> to vector<8x96xf32>
    %12 = vector.extract_strided_slice %3 {offsets = [8, 0], sizes = [32, 96], strides = [1, 1]} : vector<88x128xf32> to vector<32x96xf32>
    %13 = vector.extract_strided_slice %3 {offsets = [40, 0], sizes = [32, 16], strides = [1, 1]} : vector<88x128xf32> to vector<32x16xf32>
    %14 = vector.extract_strided_slice %3 {offsets = [72, 0], sizes = [16, 3], strides = [1, 1]} : vector<88x128xf32> to vector<16x3xf32>
    %cst = arith.constant dense<0.000000e+00> : vector<24x96xf32>
    %15 = tpu.matmul %0, %11, %cst {dimension_numbers = #tpu.dot_dimension_numbers<[1], [0], [0], [1], [0, 0, 1, 1], [], []>} : vector<24x8xf32>, vector<8x96xf32>, vector<24x96xf32> -> vector<24x96xf32>
    %16 = vector.broadcast %5 : vector<1x96xf32> to vector<24x96xf32>
    %17 = arith.addf %15, %16 : vector<24x96xf32>
    %18 = arith.truncf %17 : vector<24x96xf32> to vector<24x96xbf16>
    %cst_9 = arith.constant dense<0.000000e+00> : vector<64x96xf32>
    %19 = tpu.matmul %1, %18, %cst_9 {dimension_numbers = #tpu.dot_dimension_numbers<[1], [0], [0], [1], [0, 0, 1, 1], [], []>} : vector<64x24xbf16>, vector<24x96xbf16>, vector<64x96xf32> -> vector<64x96xf32>
    %20 = vector.extract_strided_slice %19 {offsets = [0, 0], sizes = [16, 96], strides = [1, 1]} : vector<64x96xf32> to vector<16x96xf32>
    %21 = vector.extract_strided_slice %20 {offsets = [0, 0], sizes = [16, 32], strides = [1, 1]} : vector<16x96xf32> to vector<16x32xf32>
    %22 = vector.extract_strided_slice %6 {offsets = [0, 0], sizes = [1, 32], strides = [1, 1]} : vector<1x96xf32> to vector<1x32xf32>
    %23 = vector.broadcast %22 : vector<1x32xf32> to vector<16x32xf32>
    %24 = arith.addf %21, %23 : vector<16x32xf32>
    %25 = arith.negf %24 : vector<16x32xf32>
    %26 = math.exp %25 : vector<16x32xf32>
    %cst_10 = arith.constant 1.000000e+00 : f32
    %27 = vector.broadcast %cst_10 : f32 to vector<16x32xf32>
    %28 = arith.addf %27, %26 : vector<16x32xf32>
    %29 = arith.divf %27, %28 : vector<16x32xf32>
    %30 = vector.extract_strided_slice %20 {offsets = [0, 32], sizes = [16, 32], strides = [1, 1]} : vector<16x96xf32> to vector<16x32xf32>
    %31 = vector.extract_strided_slice %6 {offsets = [0, 32], sizes = [1, 32], strides = [1, 1]} : vector<1x96xf32> to vector<1x32xf32>
    %32 = vector.broadcast %31 : vector<1x32xf32> to vector<16x32xf32>
    %33 = arith.addf %30, %32 : vector<16x32xf32>
    %34 = arith.negf %33 : vector<16x32xf32>
    %35 = math.exp %34 : vector<16x32xf32>
    %cst_11 = arith.constant 1.000000e+00 : f32
    %36 = vector.broadcast %cst_11 : f32 to vector<16x32xf32>
    %37 = arith.addf %36, %35 : vector<16x32xf32>
    %38 = arith.divf %36, %37 : vector<16x32xf32>
    %39 = vector.extract_strided_slice %20 {offsets = [0, 64], sizes = [16, 32], strides = [1, 1]} : vector<16x96xf32> to vector<16x32xf32>
    %40 = vector.extract_strided_slice %6 {offsets = [0, 64], sizes = [1, 32], strides = [1, 1]} : vector<1x96xf32> to vector<1x32xf32>
    %41 = vector.broadcast %40 : vector<1x32xf32> to vector<16x32xf32>
    %42 = arith.mulf %29, %41 : vector<16x32xf32>
    %43 = arith.addf %39, %42 : vector<16x32xf32>
    %44 = math.tanh %43 : vector<16x32xf32>
    %cst_12 = arith.constant 1.000000e+00 : f32
    %45 = vector.broadcast %cst_12 : f32 to vector<16x32xf32>
    %46 = arith.subf %45, %38 : vector<16x32xf32>
    %47 = arith.mulf %46, %44 : vector<16x32xf32>
    %48 = vector.extract_strided_slice %19 {offsets = [16, 0], sizes = [16, 96], strides = [1, 1]} : vector<64x96xf32> to vector<16x96xf32>
    %cst_13 = arith.constant dense<0.000000e+00> : vector<16x96xf32>
    %49 = tpu.matmul %47, %12, %cst_13 {dimension_numbers = #tpu.dot_dimension_numbers<[1], [0], [0], [1], [0, 0, 1, 1], [], []>} : vector<16x32xf32>, vector<32x96xf32>, vector<16x96xf32> -> vector<16x96xf32>
    %50 = vector.broadcast %6 : vector<1x96xf32> to vector<16x96xf32>
    %51 = arith.addf %49, %50 : vector<16x96xf32>
    %52 = vector.extract_strided_slice %48 {offsets = [0, 0], sizes = [16, 32], strides = [1, 1]} : vector<16x96xf32> to vector<16x32xf32>
    %53 = vector.extract_strided_slice %51 {offsets = [0, 0], sizes = [16, 32], strides = [1, 1]} : vector<16x96xf32> to vector<16x32xf32>
    %54 = arith.addf %52, %53 : vector<16x32xf32>
    %55 = arith.negf %54 : vector<16x32xf32>
    %56 = math.exp %55 : vector<16x32xf32>
    %cst_14 = arith.constant 1.000000e+00 : f32
    %57 = vector.broadcast %cst_14 : f32 to vector<16x32xf32>
    %58 = arith.addf %57, %56 : vector<16x32xf32>
    %59 = arith.divf %57, %58 : vector<16x32xf32>
    %60 = vector.extract_strided_slice %48 {offsets = [0, 32], sizes = [16, 32], strides = [1, 1]} : vector<16x96xf32> to vector<16x32xf32>
    %61 = vector.extract_strided_slice %51 {offsets = [0, 32], sizes = [16, 32], strides = [1, 1]} : vector<16x96xf32> to vector<16x32xf32>
    %62 = arith.addf %60, %61 : vector<16x32xf32>
    %63 = arith.negf %62 : vector<16x32xf32>
    %64 = math.exp %63 : vector<16x32xf32>
    %cst_15 = arith.constant 1.000000e+00 : f32
    %65 = vector.broadcast %cst_15 : f32 to vector<16x32xf32>
    %66 = arith.addf %65, %64 : vector<16x32xf32>
    %67 = arith.divf %65, %66 : vector<16x32xf32>
    %68 = vector.extract_strided_slice %48 {offsets = [0, 64], sizes = [16, 32], strides = [1, 1]} : vector<16x96xf32> to vector<16x32xf32>
    %69 = vector.extract_strided_slice %51 {offsets = [0, 64], sizes = [16, 32], strides = [1, 1]} : vector<16x96xf32> to vector<16x32xf32>
    %70 = arith.mulf %59, %69 : vector<16x32xf32>
    %71 = arith.addf %68, %70 : vector<16x32xf32>
    %72 = math.tanh %71 : vector<16x32xf32>
    %cst_16 = arith.constant 1.000000e+00 : f32
    %73 = vector.broadcast %cst_16 : f32 to vector<16x32xf32>
    %74 = arith.subf %73, %67 : vector<16x32xf32>
    %75 = arith.mulf %74, %72 : vector<16x32xf32>
    %76 = arith.mulf %67, %47 : vector<16x32xf32>
    %77 = arith.addf %75, %76 : vector<16x32xf32>
    %78 = vector.extract_strided_slice %19 {offsets = [32, 0], sizes = [16, 96], strides = [1, 1]} : vector<64x96xf32> to vector<16x96xf32>
    %cst_17 = arith.constant dense<0.000000e+00> : vector<16x96xf32>
    %79 = tpu.matmul %77, %12, %cst_17 {dimension_numbers = #tpu.dot_dimension_numbers<[1], [0], [0], [1], [0, 0, 1, 1], [], []>} : vector<16x32xf32>, vector<32x96xf32>, vector<16x96xf32> -> vector<16x96xf32>
    %80 = vector.broadcast %6 : vector<1x96xf32> to vector<16x96xf32>
    %81 = arith.addf %79, %80 : vector<16x96xf32>
    %82 = vector.extract_strided_slice %78 {offsets = [0, 0], sizes = [16, 32], strides = [1, 1]} : vector<16x96xf32> to vector<16x32xf32>
    %83 = vector.extract_strided_slice %81 {offsets = [0, 0], sizes = [16, 32], strides = [1, 1]} : vector<16x96xf32> to vector<16x32xf32>
    %84 = arith.addf %82, %83 : vector<16x32xf32>
    %85 = arith.negf %84 : vector<16x32xf32>
    %86 = math.exp %85 : vector<16x32xf32>
    %cst_18 = arith.constant 1.000000e+00 : f32
    %87 = vector.broadcast %cst_18 : f32 to vector<16x32xf32>
    %88 = arith.addf %87, %86 : vector<16x32xf32>
    %89 = arith.divf %87, %88 : vector<16x32xf32>
    %90 = vector.extract_strided_slice %78 {offsets = [0, 32], sizes = [16, 32], strides = [1, 1]} : vector<16x96xf32> to vector<16x32xf32>
    %91 = vector.extract_strided_slice %81 {offsets = [0, 32], sizes = [16, 32], strides = [1, 1]} : vector<16x96xf32> to vector<16x32xf32>
    %92 = arith.addf %90, %91 : vector<16x32xf32>
    %93 = arith.negf %92 : vector<16x32xf32>
    %94 = math.exp %93 : vector<16x32xf32>
    %cst_19 = arith.constant 1.000000e+00 : f32
    %95 = vector.broadcast %cst_19 : f32 to vector<16x32xf32>
    %96 = arith.addf %95, %94 : vector<16x32xf32>
    %97 = arith.divf %95, %96 : vector<16x32xf32>
    %98 = vector.extract_strided_slice %78 {offsets = [0, 64], sizes = [16, 32], strides = [1, 1]} : vector<16x96xf32> to vector<16x32xf32>
    %99 = vector.extract_strided_slice %81 {offsets = [0, 64], sizes = [16, 32], strides = [1, 1]} : vector<16x96xf32> to vector<16x32xf32>
    %100 = arith.mulf %89, %99 : vector<16x32xf32>
    %101 = arith.addf %98, %100 : vector<16x32xf32>
    %102 = math.tanh %101 : vector<16x32xf32>
    %cst_20 = arith.constant 1.000000e+00 : f32
    %103 = vector.broadcast %cst_20 : f32 to vector<16x32xf32>
    %104 = arith.subf %103, %97 : vector<16x32xf32>
    %105 = arith.mulf %104, %102 : vector<16x32xf32>
    %106 = arith.mulf %97, %77 : vector<16x32xf32>
    %107 = arith.addf %105, %106 : vector<16x32xf32>
    %108 = vector.extract_strided_slice %19 {offsets = [48, 0], sizes = [16, 96], strides = [1, 1]} : vector<64x96xf32> to vector<16x96xf32>
    %cst_21 = arith.constant dense<0.000000e+00> : vector<16x96xf32>
    %109 = tpu.matmul %107, %12, %cst_21 {dimension_numbers = #tpu.dot_dimension_numbers<[1], [0], [0], [1], [0, 0, 1, 1], [], []>} : vector<16x32xf32>, vector<32x96xf32>, vector<16x96xf32> -> vector<16x96xf32>
    %110 = vector.broadcast %6 : vector<1x96xf32> to vector<16x96xf32>
    %111 = arith.addf %109, %110 : vector<16x96xf32>
    %112 = vector.extract_strided_slice %108 {offsets = [0, 0], sizes = [16, 32], strides = [1, 1]} : vector<16x96xf32> to vector<16x32xf32>
    %113 = vector.extract_strided_slice %111 {offsets = [0, 0], sizes = [16, 32], strides = [1, 1]} : vector<16x96xf32> to vector<16x32xf32>
    %114 = arith.addf %112, %113 : vector<16x32xf32>
    %115 = arith.negf %114 : vector<16x32xf32>
    %116 = math.exp %115 : vector<16x32xf32>
    %cst_22 = arith.constant 1.000000e+00 : f32
    %117 = vector.broadcast %cst_22 : f32 to vector<16x32xf32>
    %118 = arith.addf %117, %116 : vector<16x32xf32>
    %119 = arith.divf %117, %118 : vector<16x32xf32>
    %120 = vector.extract_strided_slice %108 {offsets = [0, 32], sizes = [16, 32], strides = [1, 1]} : vector<16x96xf32> to vector<16x32xf32>
    %121 = vector.extract_strided_slice %111 {offsets = [0, 32], sizes = [16, 32], strides = [1, 1]} : vector<16x96xf32> to vector<16x32xf32>
    %122 = arith.addf %120, %121 : vector<16x32xf32>
    %123 = arith.negf %122 : vector<16x32xf32>
    %124 = math.exp %123 : vector<16x32xf32>
    %cst_23 = arith.constant 1.000000e+00 : f32
    %125 = vector.broadcast %cst_23 : f32 to vector<16x32xf32>
    %126 = arith.addf %125, %124 : vector<16x32xf32>
    %127 = arith.divf %125, %126 : vector<16x32xf32>
    %128 = vector.extract_strided_slice %108 {offsets = [0, 64], sizes = [16, 32], strides = [1, 1]} : vector<16x96xf32> to vector<16x32xf32>
    %129 = vector.extract_strided_slice %111 {offsets = [0, 64], sizes = [16, 32], strides = [1, 1]} : vector<16x96xf32> to vector<16x32xf32>
    %130 = arith.mulf %119, %129 : vector<16x32xf32>
    %131 = arith.addf %128, %130 : vector<16x32xf32>
    %132 = math.tanh %131 : vector<16x32xf32>
    %cst_24 = arith.constant 1.000000e+00 : f32
    %133 = vector.broadcast %cst_24 : f32 to vector<16x32xf32>
    %134 = arith.subf %133, %127 : vector<16x32xf32>
    %135 = arith.mulf %134, %132 : vector<16x32xf32>
    %136 = arith.mulf %127, %107 : vector<16x32xf32>
    %137 = arith.addf %135, %136 : vector<16x32xf32>
    %cst_25 = arith.constant dense<0.000000e+00> : vector<8xf32>
    %138 = vector.multi_reduction <add>, %2, %cst_25 [1] : vector<8x16xf32> to vector<8xf32>
    %139 = vector.shape_cast %138 : vector<8xf32> to vector<8x1xf32>
    %cst_26 = arith.constant dense<0.000000e+00> : vector<8x32xf32>
    %140 = tpu.matmul %2, %137, %cst_26 {dimension_numbers = #tpu.dot_dimension_numbers<[1], [0], [0], [1], [0, 0, 1, 1], [], []>} : vector<8x16xf32>, vector<16x32xf32>, vector<8x32xf32> -> vector<8x32xf32>
    %cst_27 = arith.constant 1.000000e+00 : f32
    %141 = vector.broadcast %cst_27 : f32 to vector<8x1xf32>
    %142 = arith.maximumf %139, %141 : vector<8x1xf32>
    %143 = vector.broadcast %142 : vector<8x1xf32> to vector<8x32xf32>
    %144 = arith.divf %140, %143 : vector<8x32xf32>
    %145 = tpu.iota {dimensions = array<i32: 0>} : vector<8x1xi32>
    %c2_i32 = arith.constant 2 : i32
    %146 = vector.broadcast %c2_i32 : i32 to vector<8x1xi32>
    %147 = arith.cmpi slt, %145, %146 : vector<8x1xi32>
    %148 = arith.extui %147 : vector<8x1xi1> to vector<8x1xi32>
    %149 = arith.sitofp %148 : vector<8x1xi32> to vector<8x1xf32>
    %150 = vector.broadcast %149 : vector<8x1xf32> to vector<8x32xf32>
    %151 = arith.mulf %144, %150 : vector<8x32xf32>
    %cst_28 = arith.constant dense<0.000000e+00> : vector<32xf32>
    %152 = vector.multi_reduction <add>, %151, %cst_28 [0] : vector<8x32xf32> to vector<32xf32>
    %153 = vector.shape_cast %152 : vector<32xf32> to vector<1x32xf32>
    %cst_29 = arith.constant 5.000000e-01 : f32
    %154 = vector.broadcast %cst_29 : f32 to vector<1x32xf32>
    %155 = arith.mulf %153, %154 : vector<1x32xf32>
    %156 = vector.broadcast %155 : vector<1x32xf32> to vector<8x32xf32>
    %157 = arith.subf %144, %156 : vector<8x32xf32>
    %158 = vector.broadcast %149 : vector<8x1xf32> to vector<8x32xf32>
    %159 = arith.mulf %157, %158 : vector<8x32xf32>
    %160 = arith.mulf %159, %159 : vector<8x32xf32>
    %cst_30 = arith.constant dense<0.000000e+00> : vector<32xf32>
    %161 = vector.multi_reduction <add>, %160, %cst_30 [0] : vector<8x32xf32> to vector<32xf32>
    %162 = vector.shape_cast %161 : vector<32xf32> to vector<1x32xf32>
    %cst_31 = arith.constant 5.000000e-01 : f32
    %163 = vector.broadcast %cst_31 : f32 to vector<1x32xf32>
    %164 = arith.mulf %162, %163 : vector<1x32xf32>
    %165 = vector.broadcast %155 : vector<1x32xf32> to vector<8x32xf32>
    %166 = arith.subf %144, %165 : vector<8x32xf32>
    %cst_32 = arith.constant 9.99999974E-6 : f32
    %167 = vector.broadcast %cst_32 : f32 to vector<1x32xf32>
    %168 = arith.addf %164, %167 : vector<1x32xf32>
    %169 = math.rsqrt %168 : vector<1x32xf32>
    %170 = vector.broadcast %169 : vector<1x32xf32> to vector<8x32xf32>
    %171 = arith.mulf %166, %170 : vector<8x32xf32>
    %172 = vector.broadcast %7 : vector<1x32xf32> to vector<8x32xf32>
    %173 = arith.mulf %171, %172 : vector<8x32xf32>
    %174 = vector.broadcast %8 : vector<1x32xf32> to vector<8x32xf32>
    %175 = arith.addf %173, %174 : vector<8x32xf32>
    %cst_33 = arith.constant dense<0.000000e+00> : vector<8x16xf32>
    %176 = tpu.matmul %175, %13, %cst_33 {dimension_numbers = #tpu.dot_dimension_numbers<[1], [0], [0], [1], [0, 0, 1, 1], [], []>} : vector<8x32xf32>, vector<32x16xf32>, vector<8x16xf32> -> vector<8x16xf32>
    %177 = vector.broadcast %9 : vector<1x16xf32> to vector<8x16xf32>
    %178 = arith.addf %176, %177 : vector<8x16xf32>
    %cst_34 = arith.constant 0.000000e+00 : f32
    %179 = vector.broadcast %cst_34 : f32 to vector<8x16xf32>
    %180 = arith.maximumf %178, %179 : vector<8x16xf32>
    %cst_35 = arith.constant dense<0.000000e+00> : vector<8x3xf32>
    %181 = tpu.matmul %180, %14, %cst_35 {dimension_numbers = #tpu.dot_dimension_numbers<[1], [0], [0], [1], [0, 0, 1, 1], [], []>} : vector<8x16xf32>, vector<16x3xf32>, vector<8x3xf32> -> vector<8x3xf32>
    %182 = vector.broadcast %10 : vector<1x3xf32> to vector<8x3xf32>
    %183 = arith.addf %181, %182 : vector<8x3xf32>
    %cst_36 = arith.constant dense<0xFF800000> : vector<8xf32>
    %184 = vector.multi_reduction <maximumf>, %183, %cst_36 [1] : vector<8x3xf32> to vector<8xf32>
    %185 = vector.shape_cast %184 : vector<8xf32> to vector<8x1xf32>
    %186 = vector.broadcast %185 : vector<8x1xf32> to vector<8x3xf32>
    %187 = arith.subf %183, %186 : vector<8x3xf32>
    %188 = math.exp %187 : vector<8x3xf32>
    %cst_37 = arith.constant dense<0.000000e+00> : vector<8xf32>
    %189 = vector.multi_reduction <add>, %188, %cst_37 [1] : vector<8x3xf32> to vector<8xf32>
    %190 = vector.shape_cast %189 : vector<8xf32> to vector<8x1xf32>
    %191 = math.log %190 : vector<8x1xf32>
    %192 = arith.addf %191, %185 : vector<8x1xf32>
    %193 = vector.broadcast %192 : vector<8x1xf32> to vector<8x3xf32>
    %194 = arith.subf %183, %193 : vector<8x3xf32>
    %c0_38 = arith.constant 0 : index
    %c0_39 = arith.constant 0 : index
    %195 = vector.load %arg5[%c0_38, %c0_39] : memref<8x3xf32, #tpu.memory_space<vmem>>, vector<8x3xf32>
    tpu.vector_store %arg5[%c0_38, %c0_39], %194 {strides = array<i32>} : memref<8x3xf32, #tpu.memory_space<vmem>>, vector<8x3xf32>,
    return
  }
}

</mosaic_0001>

<llo_original>
// kernel: tpu_custom_call.1
$region0: #{tpu_custom_call.1}
  #allocation0 [shape = 'u32[]', space=smem, size = 0x4, offset = 0x4, fixed_abs, tag = 'smem constant byte address 0x4 - core index']
  #allocation1 [shape = 'u32[144,128]{1,0:T(1,128)}', space=vmem, size = 0x12000, scoped, tag = 'internal scratch']
  %s0 = inlined_call_operand.vmem [shape: f32[24,8], index: 0, kind: input, shape index: {}]
  %s1 = inlined_call_operand.vmem [shape: bf16[64,24], index: 1, kind: input, shape index: {}]
  %s2 = inlined_call_operand.vmem [shape: f32[8,16], index: 2, kind: input, shape index: {}]
  %s3 = inlined_call_operand.hbm [shape: f32[88,128], index: 3, kind: input, shape index: {}]
  %s4 = inlined_call_operand.vmem [shape: f32[8,128], index: 4, kind: input, shape index: {}]
  %s5 = inlined_call_operand.vmem [shape: f32[8,3], index: 5, kind: output, shape index: {}]
  %s6 = sld [smem:[#allocation0]]
  $region34: #{tpu_custom_call.1} parent=0
    _
  %s8 = ssub.s32 1, %s6
  %s9 = scalar_select 0, %s8, %s6
  $region1: #{tpu_custom_call.1} parent=0
    #allocation2 [shape = 'u8[45056]{0}', space=vmem, size = 0xb000, scoped, tag = 'input window, operand 3, single buffered']
    #allocation3 [shape = 's32[1]{0}', space=sflag, size = 0x4, scoped, tag = 'scoped memory for tpu_custom_call.1']
    %10 = vsyncpa [#allocation3], 0
    // Predicated region
    $region2: #{tpu_custom_call.1} parent=1 // pred_check
      _
    $region3: #{tpu_custom_call.1} parent=1 // pred_check_branch
      %12 = sbr.rel (0) target = $region5
    $region4: #{tpu_custom_call.1} parent=1 // pred_region
      _
    $region5: #{tpu_custom_call.1} parent=1 // pred_fallthru
      _
    // Predicated region
    $region6: #{tpu_custom_call.1} parent=1 // pred_check
      _
    $region7: #{tpu_custom_call.1} parent=1 // pred_check_branch
      %14 = sbr.rel (0) target = $region9
    $region8: #{tpu_custom_call.1} parent=1 // pred_region
      _
    $region9: #{tpu_custom_call.1} parent=1 // pred_fallthru
      _
    // Predicated region
    $region10: #{tpu_custom_call.1} parent=1 // pred_check
      _
    $region11: #{tpu_custom_call.1} parent=1 // pred_check_branch
      %16 = sbr.rel (0) target = $region13
    $region12: #{tpu_custom_call.1} parent=1 // pred_region
      _
    $region13: #{tpu_custom_call.1} parent=1 // pred_fallthru
      _
    // Predicated region
    $region14: #{tpu_custom_call.1} parent=1 // pred_check
      _
    $region15: #{tpu_custom_call.1} parent=1 // pred_check_branch
      %18 = sbr.rel (0) target = $region17
    $region16: #{tpu_custom_call.1} parent=1 // pred_region
      %s20 = ssub.s32 1408, 1408
      %21 = vsyncadd [#allocation3], %s20
      %s22 = sshll.u32 [#allocation2], 4
      %s23 = int_to_ptr.vmem [resolvable:$true] %s22
      %28 = dma.hbm_to_vmem [thread:$0]  %s3, 1408, %s23, [#allocation3], 128, 128, 8
    $region17: #{tpu_custom_call.1} parent=1 // pred_fallthru
      _
    // Predicated region
    $region18: #{tpu_custom_call.1} parent=1 // pred_check
      _
    $region19: #{tpu_custom_call.1} parent=1 // pred_check_branch
      %30 = sbr.rel (0) target = $region21
    $region20: #{tpu_custom_call.1} parent=1 // pred_region
      _
    $region21: #{tpu_custom_call.1} parent=1 // pred_fallthru
      _
    // Predicated region
    $region22: #{tpu_custom_call.1} parent=1 // pred_check
      _
    $region23: #{tpu_custom_call.1} parent=1 // pred_check_branch
      %32 = sbr.rel (0) target = $region25
    $region24: #{tpu_custom_call.1} parent=1 // pred_region
      %33 = dma.done [#allocation3], 1408
    $region25: #{tpu_custom_call.1} parent=1 // pred_fallthru
      _
    %v35 = vld [vmem:[%s0] sm:$0xff]
    %v36 = vld [vmem:[%s0 + $0x8] sm:$0xff]
    %v37 = vld [vmem:[%s0 + $0x10] sm:$0xff]
    %v38 = vld [vmem:[%s1] sm:$0xf]
    %v39 = vld [vmem:[%s1 + $0x4] sm:$0xf]
    %v40 = vld [vmem:[%s1 + $0x8] sm:$0xf]
    %v41 = vld [vmem:[%s1 + $0xc] sm:$0xf]
    %v42 = vld [vmem:[%s1 + $0x10] sm:$0xf]
    %v43 = vld [vmem:[%s1 + $0x14] sm:$0xf]
    %v44 = vld [vmem:[%s1 + $0x18] sm:$0xf]
    %v45 = vld [vmem:[%s1 + $0x1c] sm:$0xf]
    %v46 = vld [vmem:[%s2] sm:$0xff]
    %v47 = vld [vmem:[#allocation2] sm:$0xff]
    %v48 = vld [vmem:[#allocation2 + $0x8] sm:$0xff]
    %v49 = vld [vmem:[#allocation2 + $0x10] sm:$0xff]
    %v50 = vld [vmem:[#allocation2 + $0x18] sm:$0xff]
    %v51 = vld [vmem:[#allocation2 + $0x20] sm:$0xff]
    %v52 = vld [vmem:[#allocation2 + $0x28] sm:$0xff]
    %v53 = vld [vmem:[#allocation2 + $0x30] sm:$0xff]
    %v54 = vld [vmem:[#allocation2 + $0x38] sm:$0xff]
    %v55 = vld [vmem:[#allocation2 + $0x40] sm:$0xff]
    %v56 = vld [vmem:[#allocation2 + $0x48] sm:$0xff]
    %v57 = vld [vmem:[#allocation2 + $0x50] sm:$0xff]
    %v58 = vld [vmem:[%s4] sm:$0xff]
    %v59 = vlaneseq
    %v60 = vshrl.u32 %v59, 7
    %v61 = vsub.s32 0, %v60
    %v62 = vrot.slane %v58, %v61
    %vm63 = vcmask 64512
    %v65 = vsel %vm63, %v35, 0
    %v68 = vsel %vm63, %v36, 0
    %v71 = vsel %vm63, %v37, 0
    %73 = vmatprep.subr.mxu0 0.0
    %74 = vmatpush1.msra.mxu0 0.0
    %75 = vmatprep.subr.mxu0 0.0
    %76 = vmatpush1.msra.mxu0 0.0
    %77 = vmatprep.subr.mxu0 0.0
    %78 = vmatpush1.msra.mxu0 0.0
    %79 = vmatprep.subr.mxu0 0.0
    %80 = vmatpush1.msra.mxu0 0.0
    %81 = vmatprep.subr.mxu0 0.0
    %82 = vmatpush1.msra.mxu0 0.0
    %83 = vmatprep.subr.mxu0 0.0
    %84 = vmatpush1.msra.mxu0 0.0
    %85 = vmatprep.subr.mxu0 0.0
    %86 = vmatpush1.msra.mxu0 0.0
    %87 = vmatprep.subr.mxu0 0.0
    %88 = vmatpush1.msra.mxu0 0.0
    %89 = vmatprep.subr.mxu0 0.0
    %90 = vmatpush1.msra.mxu0 0.0
    %91 = vmatprep.subr.mxu0 0.0
    %92 = vmatpush1.msra.mxu0 0.0
    %93 = vmatprep.subr.mxu0 0.0
    %94 = vmatpush1.msra.mxu0 0.0
    %95 = vmatprep.subr.mxu0 0.0
    %96 = vmatpush1.msra.mxu0 0.0
    %97 = vmatprep.subr.mxu0 0.0
    %98 = vmatpush1.msra.mxu0 0.0
    %99 = vmatprep.subr.mxu0 0.0
    %100 = vmatpush1.msra.mxu0 0.0
    %101 = vmatprep.subr.mxu0 0.0
    %102 = vmatpush1.msra.mxu0 0.0
    %103 = vmatprep.subr.mxu0 0.0
    %104 = vmatpush1.msra.mxu0 %v47
    %105 = vmatprep.subr.mxu0 0.0
    %106 = vmatpush2.msra.mxu0 0.0
    %107 = vmatprep.subr.mxu0 0.0
    %108 = vmatpush2.msra.mxu0 0.0
    %109 = vmatprep.subr.mxu0 0.0
    %110 = vmatpush2.msra.mxu0 0.0
    %111 = vmatprep.subr.mxu0 0.0
    %112 = vmatpush2.msra.mxu0 0.0
    %113 = vmatprep.subr.mxu0 0.0
    %114 = vmatpush2.msra.mxu0 0.0
    %115 = vmatprep.subr.mxu0 0.0
    %116 = vmatpush2.msra.mxu0 0.0
    %117 = vmatprep.subr.mxu0 0.0
    %118 = vmatpush2.msra.mxu0 0.0
    %119 = vmatprep.subr.mxu0 0.0
    %120 = vmatpush2.msra.mxu0 0.0
    %121 = vmatprep.subr.mxu0 0.0
    %122 = vmatpush2.msra.mxu0 0.0
    %123 = vmatprep.subr.mxu0 0.0
    %124 = vmatpush2.msra.mxu0 0.0
    %125 = vmatprep.subr.mxu0 0.0
    %126 = vmatpush2.msra.mxu0 0.0
    %127 = vmatprep.subr.mxu0 0.0
    %128 = vmatpush2.msra.mxu0 0.0
    %129 = vmatprep.subr.mxu0 0.0
    %130 = vmatpush2.msra.mxu0 0.0
    %131 = vmatprep.subr.mxu0 0.0
    %132 = vmatpush2.msra.mxu0 0.0
    %133 = vmatprep.subr.mxu0 0.0
    %134 = vmatpush2.msra.mxu0 0.0
    %135 = vmatprep.subr.mxu0 0.0
    %136 = vmatpush2.msra.mxu0 0.0
    %137 = vmatprep.mubr.f32.mxu0 0.0
    %138 = vmatmul.mubr.f32.gmra.mxu0 %v65
    %v139 = vpop.f32.mrf.mxu0
    %v140 = vadd.f32 %v62, %v139
    %v141 = vpop.f32.mrf.mxu0
    %142 = vmatprep.mubr.f32.mxu0 0.0
    %143 = vmatmul.mubr.f32.gmra.mxu0 %v68
    %v144 = vpop.f32.mrf.mxu0
    %v145 = vadd.f32 %v62, %v144
    %v146 = vpop.f32.mrf.mxu0
    %147 = vmatprep.mubr.f32.mxu0 0.0
    %148 = vmatmul.mubr.f32.gmra.mxu0 %v71
    %v149 = vpop.f32.mrf.mxu0
    %v150 = vadd.f32 %v62, %v149
    %v151 = vpop.f32.mrf.mxu0
    %152 = vdwg.mxu0
    %v153 = vpack.c.bf16 %v145, %v140
    %v154 = vpack.c.bf16 %v150, %v150
    %v163 = vunpack.c.l.b16 %v38
    %v164 = vunpack.c.l.b16 %v39
    %v165 = vunpack.c.l.b16 %v40
    %v166 = vunpack.c.l.b16 %v41
    %v167 = vunpack.c.l.b16 %v42
    %v168 = vunpack.c.l.b16 %v43
    %v169 = vunpack.c.l.b16 %v44
    %v170 = vunpack.c.l.b16 %v45
    %v171 = vpack.c.b16 %v164, %v163
    %v172 = vpack.c.b16 %v166, %v165
    %v173 = vpack.c.b16 %v168, %v167
    %v174 = vpack.c.b16 %v170, %v169
    %vm175 = vcmask 195584
    %v177 = vsel %vm175, %v171, 0
    %v180 = vsel %vm175, %v172, 0
    %v183 = vsel %vm175, %v173, 0
    %v186 = vsel %vm175, %v174, 0
    %vm188 = vcmask 1043456
    %v190 = vsel %vm188, %v154, 0
    %192 = vmatprep.subr.bf16.mxu0 0
    %193 = vmatpush1.bf16.msra.mxu0 0
    %194 = vmatprep.subr.bf16.mxu0 0
    %195 = vmatpush1.bf16.msra.mxu0 0
    %196 = vmatprep.subr.bf16.mxu0 0
    %197 = vmatpush1.bf16.msra.mxu0 0
    %198 = vmatprep.subr.bf16.mxu0 0
    %199 = vmatpush1.bf16.msra.mxu0 0
    %200 = vmatprep.subr.bf16.mxu0 0
    %201 = vmatpush1.bf16.msra.mxu0 0
    %202 = vmatprep.subr.bf16.mxu0 0
    %203 = vmatpush1.bf16.msra.mxu0 0
    %204 = vmatprep.subr.bf16.mxu0 0
    %205 = vmatpush1.bf16.msra.mxu0 %v190
    %206 = vmatprep.subr.bf16.mxu0 0
    %207 = vmatpush1.bf16.msra.mxu0 %v153
    %208 = vmatprep.subr.bf16.mxu0 0
    %209 = vmatpush2.bf16.msra.mxu0 0
    %210 = vmatprep.subr.bf16.mxu0 0
    %211 = vmatpush2.bf16.msra.mxu0 0
    %212 = vmatprep.subr.bf16.mxu0 0
    %213 = vmatpush2.bf16.msra.mxu0 0
    %214 = vmatprep.subr.bf16.mxu0 0
    %215 = vmatpush2.bf16.msra.mxu0 0
    %216 = vmatprep.subr.bf16.mxu0 0
    %217 = vmatpush2.bf16.msra.mxu0 0
    %218 = vmatprep.subr.bf16.mxu0 0
    %219 = vmatpush2.bf16.msra.mxu0 0
    %220 = vmatprep.subr.bf16.mxu0 0
    %221 = vmatpush2.bf16.msra.mxu0 0
    %222 = vmatprep.subr.bf16.mxu0 0
    %223 = vmatpush2.bf16.msra.mxu0 0
    %224 = vmatprep.mubr.bf16.mxu0 0
    %225 = vmatmul.mubr.bf16.gmra.mxu0 %v177
    %v226 = vpop.f32.mrf.mxu0
    %v227 = vadd.f32 0.0, %v226
    %v228 = vpop.f32.mrf.mxu0
    %v229 = vpop.f32.mrf.mxu0
    %v230 = vadd.f32 0.0, %v229
    %v231 = vpop.f32.mrf.mxu0
    %232 = vmatprep.mubr.bf16.mxu0 0
    %233 = vmatmul.mubr.bf16.gmra.mxu0 %v180
    %v234 = vpop.f32.mrf.mxu0
    %v235 = vadd.f32 0.0, %v234
    %v236 = vpop.f32.mrf.mxu0
    %v237 = vpop.f32.mrf.mxu0
    %v238 = vadd.f32 0.0, %v237
    %v239 = vpop.f32.mrf.mxu0
    %240 = vmatprep.mubr.bf16.mxu0 0
    %241 = vmatmul.mubr.bf16.gmra.mxu0 %v183
    %v242 = vpop.f32.mrf.mxu0
    %v243 = vadd.f32 0.0, %v242
    %v244 = vpop.f32.mrf.mxu0
    %v245 = vpop.f32.mrf.mxu0
    %v246 = vadd.f32 0.0, %v245
    %v247 = vpop.f32.mrf.mxu0
    %248 = vmatprep.mubr.bf16.mxu0 0
    %249 = vmatmul.mubr.bf16.gmra.mxu0 %v186
    %v250 = vpop.f32.mrf.mxu0
    %v251 = vadd.f32 0.0, %v250
    %v252 = vpop.f32.mrf.mxu0
    %v253 = vpop.f32.mrf.mxu0
    %v254 = vadd.f32 0.0, %v253
    %v255 = vpop.f32.mrf.mxu0
    %256 = vdwg.mxu0
    %v257 = vlaneseq
    %v258 = vshrl.u32 %v257, 7
    %v259 = vsub.s32 1, %v258
    %v260 = vrot.slane %v58, %v259
    %v261 = vadd.f32 %v227, %v260
    %v262 = vadd.f32 %v230, %v260
    %v263 = vxor.u32 %v261, 2147483648
    %v264 = vxor.u32 %v262, 2147483648
    %v265 = vmul.f32 %v263, 1.442695
    %v266 = vpow.pop %v265
    %v267 = vmul.f32 %v264, 1.442695
    %v268 = vpow.pop %v267
    %v269 = vadd.f32 %v266, 1.0
    %v270 = vadd.f32 %v268, 1.0
    %v271 = vrcp.pop %v269
    %v272 = vmul.f32 1.0, %v271
    %v273 = vrcp.pop %v270
    %v274 = vmul.f32 1.0, %v273
    %276 = vrot.lane.b32.xlu0 %v260, 64
    %v277 = vpop.permute.xlu0 %276
    %v279 = vmul.f32 %v272, %v277
    %v280 = vmul.f32 %v274, %v277
    %283 = vrot.lane.b32.xlu0 %v279, 64
    %v284 = vpop.permute.xlu0 %283
    %285 = vrot.lane.b32.xlu0 %v280, 64
    %v286 = vpop.permute.xlu0 %285
    %v289 = vadd.f32 %v227, %v284
    %v290 = vadd.f32 %v230, %v286
    %v291 = vtanh.pop %v289
    %v292 = vtanh.pop %v290
    %v293 = vsub.f32 1.0, %v272
    %v294 = vsub.f32 1.0, %v274
    %297 = vrot.lane.b32.xlu0 %v291, 96
    %v298 = vpop.permute.xlu0 %297
    %299 = vrot.lane.b32.xlu0 %v292, 96
    %v300 = vpop.permute.xlu0 %299
    %v303 = vmul.f32 %v293, %v298
    %v304 = vmul.f32 %v294, %v300
    %307 = vrot.lane.b32.xlu0 %v303, 96
    %v308 = vpop.permute.xlu0 %307
    %309 = vrot.lane.b32.xlu0 %v304, 96
    %v310 = vpop.permute.xlu0 %309
    %vm311 = vcmask 261120
    %v312 = vsel %vm311, %v308, 0
    %v314 = vsel %vm311, %v310, 0
    %316 = vmatprep.subr.mxu0 0.0
    %317 = vmatpush1.msra.mxu0 0.0
    %318 = vmatprep.subr.mxu0 0.0
    %319 = vmatpush1.msra.mxu0 0.0
    %320 = vmatprep.subr.mxu0 0.0
    %321 = vmatpush1.msra.mxu0 0.0
    %322 = vmatprep.subr.mxu0 0.0
    %323 = vmatpush1.msra.mxu0 0.0
    %324 = vmatprep.subr.mxu0 0.0
    %325 = vmatpush1.msra.mxu0 0.0
    %326 = vmatprep.subr.mxu0 0.0
    %327 = vmatpush1.msra.mxu0 0.0
    %328 = vmatprep.subr.mxu0 0.0
    %329 = vmatpush1.msra.mxu0 0.0
    %330 = vmatprep.subr.mxu0 0.0
    %331 = vmatpush1.msra.mxu0 0.0
    %332 = vmatprep.subr.mxu0 0.0
    %333 = vmatpush1.msra.mxu0 0.0
    %334 = vmatprep.subr.mxu0 0.0
    %335 = vmatpush1.msra.mxu0 0.0
    %336 = vmatprep.subr.mxu0 0.0
    %337 = vmatpush1.msra.mxu0 0.0
    %338 = vmatprep.subr.mxu0 0.0
    %339 = vmatpush1.msra.mxu0 0.0
    %340 = vmatprep.subr.mxu0 0.0
    %341 = vmatpush1.msra.mxu0 %v51
    %342 = vmatprep.subr.mxu0 0.0
    %343 = vmatpush1.msra.mxu0 %v50
    %344 = vmatprep.subr.mxu0 0.0
    %345 = vmatpush1.msra.mxu0 %v49
    %346 = vmatprep.subr.mxu0 0.0
    %347 = vmatpush1.msra.mxu0 %v48
    %348 = vmatprep.subr.mxu0 0.0
    %349 = vmatpush2.msra.mxu0 0.0
    %350 = vmatprep.subr.mxu0 0.0
    %351 = vmatpush2.msra.mxu0 0.0
    %352 = vmatprep.subr.mxu0 0.0
    %353 = vmatpush2.msra.mxu0 0.0
    %354 = vmatprep.subr.mxu0 0.0
    %355 = vmatpush2.msra.mxu0 0.0
    %356 = vmatprep.subr.mxu0 0.0
    %357 = vmatpush2.msra.mxu0 0.0
    %358 = vmatprep.subr.mxu0 0.0
    %359 = vmatpush2.msra.mxu0 0.0
    %360 = vmatprep.subr.mxu0 0.0
    %361 = vmatpush2.msra.mxu0 0.0
    %362 = vmatprep.subr.mxu0 0.0
    %363 = vmatpush2.msra.mxu0 0.0
    %364 = vmatprep.subr.mxu0 0.0
    %365 = vmatpush2.msra.mxu0 0.0
    %366 = vmatprep.subr.mxu0 0.0
    %367 = vmatpush2.msra.mxu0 0.0
    %368 = vmatprep.subr.mxu0 0.0
    %369 = vmatpush2.msra.mxu0 0.0
    %370 = vmatprep.subr.mxu0 0.0
    %371 = vmatpush2.msra.mxu0 0.0
    %372 = vmatprep.subr.mxu0 0.0
    %373 = vmatpush2.msra.mxu0 0.0
    %374 = vmatprep.subr.mxu0 0.0
    %375 = vmatpush2.msra.mxu0 0.0
    %376 = vmatprep.subr.mxu0 0.0
    %377 = vmatpush2.msra.mxu0 0.0
    %378 = vmatprep.subr.mxu0 0.0
    %379 = vmatpush2.msra.mxu0 0.0
    %380 = vmatprep.mubr.f32.mxu0 0.0
    %381 = vmatmul.mubr.f32.gmra.mxu0 %v312
    %v382 = vpop.f32.mrf.mxu0
    %v383 = vadd.f32 %v260, %v382
    %v384 = vpop.f32.mrf.mxu0
    %385 = vmatprep.mubr.f32.mxu0 0.0
    %386 = vmatmul.mubr.f32.gmra.mxu0 %v314
    %v387 = vpop.f32.mrf.mxu0
    %v388 = vadd.f32 %v260, %v387
    %v389 = vpop.f32.mrf.mxu0
    %390 = vdwg.mxu0
    %v391 = vadd.f32 %v235, %v383
    %v392 = vadd.f32 %v238, %v388
    %v393 = vxor.u32 %v391, 2147483648
    %v394 = vxor.u32 %v392, 2147483648
    %v395 = vmul.f32 %v393, 1.442695
    %v396 = vpow.pop %v395
    %v397 = vmul.f32 %v394, 1.442695
    %v398 = vpow.pop %v397
    %v399 = vadd.f32 %v396, 1.0
    %v400 = vadd.f32 %v398, 1.0
    %v401 = vrcp.pop %v399
    %v402 = vmul.f32 1.0, %v401
    %v403 = vrcp.pop %v400
    %v404 = vmul.f32 1.0, %v403
    %407 = vrot.lane.b32.xlu0 %v383, 64
    %v408 = vpop.permute.xlu0 %407
    %409 = vrot.lane.b32.xlu0 %v388, 64
    %v410 = vpop.permute.xlu0 %409
    %v413 = vmul.f32 %v402, %v408
    %v414 = vmul.f32 %v404, %v410
    %417 = vrot.lane.b32.xlu0 %v413, 64
    %v418 = vpop.permute.xlu0 %417
    %419 = vrot.lane.b32.xlu0 %v414, 64
    %v420 = vpop.permute.xlu0 %419
    %v423 = vadd.f32 %v235, %v418
    %v424 = vadd.f32 %v238, %v420
    %v425 = vtanh.pop %v423
    %v426 = vtanh.pop %v424
    %v427 = vsub.f32 1.0, %v402
    %v428 = vsub.f32 1.0, %v404
    %431 = vrot.lane.b32.xlu0 %v425, 96
    %v432 = vpop.permute.xlu0 %431
    %433 = vrot.lane.b32.xlu0 %v426, 96
    %v434 = vpop.permute.xlu0 %433
    %v437 = vmul.f32 %v427, %v432
    %v438 = vmul.f32 %v428, %v434
    %v439 = vmul.f32 %v402, %v303
    %v440 = vmul.f32 %v404, %v304
    %v441 = vadd.f32 %v437, %v439
    %v442 = vadd.f32 %v438, %v440
    %445 = vrot.lane.b32.xlu0 %v441, 96
    %v446 = vpop.permute.xlu0 %445
    %447 = vrot.lane.b32.xlu0 %v442, 96
    %v448 = vpop.permute.xlu0 %447
    %v449 = vsel %vm311, %v446, 0
    %v451 = vsel %vm311, %v448, 0
    %453 = vmatprep.subr.mxu0 0.0
    %454 = vmatpush1.msra.mxu0 0.0
    %455 = vmatprep.subr.mxu0 0.0
    %456 = vmatpush1.msra.mxu0 0.0
    %457 = vmatprep.subr.mxu0 0.0
    %458 = vmatpush1.msra.mxu0 0.0
    %459 = vmatprep.subr.mxu0 0.0
    %460 = vmatpush1.msra.mxu0 0.0
    %461 = vmatprep.subr.mxu0 0.0
    %462 = vmatpush1.msra.mxu0 0.0
    %463 = vmatprep.subr.mxu0 0.0
    %464 = vmatpush1.msra.mxu0 0.0
    %465 = vmatprep.subr.mxu0 0.0
    %466 = vmatpush1.msra.mxu0 0.0
    %467 = vmatprep.subr.mxu0 0.0
    %468 = vmatpush1.msra.mxu0 0.0
    %469 = vmatprep.subr.mxu0 0.0
    %470 = vmatpush1.msra.mxu0 0.0
    %471 = vmatprep.subr.mxu0 0.0
    %472 = vmatpush1.msra.mxu0 0.0
    %473 = vmatprep.subr.mxu0 0.0
    %474 = vmatpush1.msra.mxu0 0.0
    %475 = vmatprep.subr.mxu0 0.0
    %476 = vmatpush1.msra.mxu0 0.0
    %477 = vmatprep.subr.mxu0 0.0
    %478 = vmatpush1.msra.mxu0 %v51
    %479 = vmatprep.subr.mxu0 0.0
    %480 = vmatpush1.msra.mxu0 %v50
    %481 = vmatprep.subr.mxu0 0.0
    %482 = vmatpush1.msra.mxu0 %v49
    %483 = vmatprep.subr.mxu0 0.0
    %484 = vmatpush1.msra.mxu0 %v48
    %485 = vmatprep.subr.mxu0 0.0
    %486 = vmatpush2.msra.mxu0 0.0
    %487 = vmatprep.subr.mxu0 0.0
    %488 = vmatpush2.msra.mxu0 0.0
    %489 = vmatprep.subr.mxu0 0.0
    %490 = vmatpush2.msra.mxu0 0.0
    %491 = vmatprep.subr.mxu0 0.0
    %492 = vmatpush2.msra.mxu0 0.0
    %493 = vmatprep.subr.mxu0 0.0
    %494 = vmatpush2.msra.mxu0 0.0
    %495 = vmatprep.subr.mxu0 0.0
    %496 = vmatpush2.msra.mxu0 0.0
    %497 = vmatprep.subr.mxu0 0.0
    %498 = vmatpush2.msra.mxu0 0.0
    %499 = vmatprep.subr.mxu0 0.0
    %500 = vmatpush2.msra.mxu0 0.0
    %501 = vmatprep.subr.mxu0 0.0
    %502 = vmatpush2.msra.mxu0 0.0
    %503 = vmatprep.subr.mxu0 0.0
    %504 = vmatpush2.msra.mxu0 0.0
    %505 = vmatprep.subr.mxu0 0.0
    %506 = vmatpush2.msra.mxu0 0.0
    %507 = vmatprep.subr.mxu0 0.0
    %508 = vmatpush2.msra.mxu0 0.0
    %509 = vmatprep.subr.mxu0 0.0
    %510 = vmatpush2.msra.mxu0 0.0
    %511 = vmatprep.subr.mxu0 0.0
    %512 = vmatpush2.msra.mxu0 0.0
    %513 = vmatprep.subr.mxu0 0.0
    %514 = vmatpush2.msra.mxu0 0.0
    %515 = vmatprep.subr.mxu0 0.0
    %516 = vmatpush2.msra.mxu0 0.0
    %517 = vmatprep.mubr.f32.mxu0 0.0
    %518 = vmatmul.mubr.f32.gmra.mxu0 %v449
    %v519 = vpop.f32.mrf.mxu0
    %v520 = vadd.f32 %v260, %v519
    %v521 = vpop.f32.mrf.mxu0
    %522 = vmatprep.mubr.f32.mxu0 0.0
    %523 = vmatmul.mubr.f32.gmra.mxu0 %v451
    %v524 = vpop.f32.mrf.mxu0
    %v525 = vadd.f32 %v260, %v524
    %v526 = vpop.f32.mrf.mxu0
    %527 = vdwg.mxu0
    %v528 = vadd.f32 %v243, %v520
    %v529 = vadd.f32 %v246, %v525
    %v530 = vxor.u32 %v528, 2147483648
    %v531 = vxor.u32 %v529, 2147483648
    %v532 = vmul.f32 %v530, 1.442695
    %v533 = vpow.pop %v532
    %v534 = vmul.f32 %v531, 1.442695
    %v535 = vpow.pop %v534
    %v536 = vadd.f32 %v533, 1.0
    %v537 = vadd.f32 %v535, 1.0
    %v538 = vrcp.pop %v536
    %v539 = vmul.f32 1.0, %v538
    %v540 = vrcp.pop %v537
    %v541 = vmul.f32 1.0, %v540
    %544 = vrot.lane.b32.xlu0 %v520, 64
    %v545 = vpop.permute.xlu0 %544
    %546 = vrot.lane.b32.xlu0 %v525, 64
    %v547 = vpop.permute.xlu0 %546
    %v550 = vmul.f32 %v539, %v545
    %v551 = vmul.f32 %v541, %v547
    %554 = vrot.lane.b32.xlu0 %v550, 64
    %v555 = vpop.permute.xlu0 %554
    %556 = vrot.lane.b32.xlu0 %v551, 64
    %v557 = vpop.permute.xlu0 %556
    %v560 = vadd.f32 %v243, %v555
    %v561 = vadd.f32 %v246, %v557
    %v562 = vtanh.pop %v560
    %v563 = vtanh.pop %v561
    %v564 = vsub.f32 1.0, %v539
    %v565 = vsub.f32 1.0, %v541
    %568 = vrot.lane.b32.xlu0 %v562, 96
    %v569 = vpop.permute.xlu0 %568
    %570 = vrot.lane.b32.xlu0 %v563, 96
    %v571 = vpop.permute.xlu0 %570
    %v574 = vmul.f32 %v564, %v569
    %v575 = vmul.f32 %v565, %v571
    %v576 = vmul.f32 %v539, %v441
    %v577 = vmul.f32 %v541, %v442
    %v578 = vadd.f32 %v574, %v576
    %v579 = vadd.f32 %v575, %v577
    %582 = vrot.lane.b32.xlu0 %v578, 96
    %v583 = vpop.permute.xlu0 %582
    %584 = vrot.lane.b32.xlu0 %v579, 96
    %v585 = vpop.permute.xlu0 %584
    %v586 = vsel %vm311, %v583, 0
    %v588 = vsel %vm311, %v585, 0
    %590 = vmatprep.subr.mxu0 0.0
    %591 = vmatpush1.msra.mxu0 0.0
    %592 = vmatprep.subr.mxu0 0.0
    %593 = vmatpush1.msra.mxu0 0.0
    %594 = vmatprep.subr.mxu0 0.0
    %595 = vmatpush1.msra.mxu0 0.0
    %596 = vmatprep.subr.mxu0 0.0
    %597 = vmatpush1.msra.mxu0 0.0
    %598 = vmatprep.subr.mxu0 0.0
    %599 = vmatpush1.msra.mxu0 0.0
    %600 = vmatprep.subr.mxu0 0.0
    %601 = vmatpush1.msra.mxu0 0.0
    %602 = vmatprep.subr.mxu0 0.0
    %603 = vmatpush1.msra.mxu0 0.0
    %604 = vmatprep.subr.mxu0 0.0
    %605 = vmatpush1.msra.mxu0 0.0
    %606 = vmatprep.subr.mxu0 0.0
    %607 = vmatpush1.msra.mxu0 0.0
    %608 = vmatprep.subr.mxu0 0.0
    %609 = vmatpush1.msra.mxu0 0.0
    %610 = vmatprep.subr.mxu0 0.0
    %611 = vmatpush1.msra.mxu0 0.0
    %612 = vmatprep.subr.mxu0 0.0
    %613 = vmatpush1.msra.mxu0 0.0
    %614 = vmatprep.subr.mxu0 0.0
    %615 = vmatpush1.msra.mxu0 %v51
    %616 = vmatprep.subr.mxu0 0.0
    %617 = vmatpush1.msra.mxu0 %v50
    %618 = vmatprep.subr.mxu0 0.0
    %619 = vmatpush1.msra.mxu0 %v49
    %620 = vmatprep.subr.mxu0 0.0
    %621 = vmatpush1.msra.mxu0 %v48
    %622 = vmatprep.subr.mxu0 0.0
    %623 = vmatpush2.msra.mxu0 0.0
    %624 = vmatprep.subr.mxu0 0.0
    %625 = vmatpush2.msra.mxu0 0.0
    %626 = vmatprep.subr.mxu0 0.0
    %627 = vmatpush2.msra.mxu0 0.0
    %628 = vmatprep.subr.mxu0 0.0
    %629 = vmatpush2.msra.mxu0 0.0
    %630 = vmatprep.subr.mxu0 0.0
    %631 = vmatpush2.msra.mxu0 0.0
    %632 = vmatprep.subr.mxu0 0.0
    %633 = vmatpush2.msra.mxu0 0.0
    %634 = vmatprep.subr.mxu0 0.0
    %635 = vmatpush2.msra.mxu0 0.0
    %636 = vmatprep.subr.mxu0 0.0
    %637 = vmatpush2.msra.mxu0 0.0
    %638 = vmatprep.subr.mxu0 0.0
    %639 = vmatpush2.msra.mxu0 0.0
    %640 = vmatprep.subr.mxu0 0.0
    %641 = vmatpush2.msra.mxu0 0.0
    %642 = vmatprep.subr.mxu0 0.0
    %643 = vmatpush2.msra.mxu0 0.0
    %644 = vmatprep.subr.mxu0 0.0
    %645 = vmatpush2.msra.mxu0 0.0
    %646 = vmatprep.subr.mxu0 0.0
    %647 = vmatpush2.msra.mxu0 0.0
    %648 = vmatprep.subr.mxu0 0.0
    %649 = vmatpush2.msra.mxu0 0.0
    %650 = vmatprep.subr.mxu0 0.0
    %651 = vmatpush2.msra.mxu0 0.0
    %652 = vmatprep.subr.mxu0 0.0
    %653 = vmatpush2.msra.mxu0 0.0
    %654 = vmatprep.mubr.f32.mxu0 0.0
    %655 = vmatmul.mubr.f32.gmra.mxu0 %v586
    %v656 = vpop.f32.mrf.mxu0
    %v657 = vadd.f32 %v260, %v656
    %v658 = vpop.f32.mrf.mxu0
    %659 = vmatprep.mubr.f32.mxu0 0.0
    %660 = vmatmul.mubr.f32.gmra.mxu0 %v588
    %v661 = vpop.f32.mrf.mxu0
    %v662 = vadd.f32 %v260, %v661
    %v663 = vpop.f32.mrf.mxu0
    %664 = vdwg.mxu0
    %v665 = vadd.f32 %v251, %v657
    %v666 = vadd.f32 %v254, %v662
    %v667 = vxor.u32 %v665, 2147483648
    %v668 = vxor.u32 %v666, 2147483648
    %v669 = vmul.f32 %v667, 1.442695
    %v670 = vpow.pop %v669
    %v671 = vmul.f32 %v668, 1.442695
    %v672 = vpow.pop %v671
    %v673 = vadd.f32 %v670, 1.0
    %v674 = vadd.f32 %v672, 1.0
    %v675 = vrcp.pop %v673
    %v676 = vmul.f32 1.0, %v675
    %v677 = vrcp.pop %v674
    %v678 = vmul.f32 1.0, %v677
    %681 = vrot.lane.b32.xlu0 %v657, 64
    %v682 = vpop.permute.xlu0 %681
    %683 = vrot.lane.b32.xlu0 %v662, 64
    %v684 = vpop.permute.xlu0 %683
    %v687 = vmul.f32 %v676, %v682
    %v688 = vmul.f32 %v678, %v684
    %691 = vrot.lane.b32.xlu0 %v687, 64
    %v692 = vpop.permute.xlu0 %691
    %693 = vrot.lane.b32.xlu0 %v688, 64
    %v694 = vpop.permute.xlu0 %693
    %v697 = vadd.f32 %v251, %v692
    %v698 = vadd.f32 %v254, %v694
    %v699 = vtanh.pop %v697
    %v700 = vtanh.pop %v698
    %v701 = vsub.f32 1.0, %v676
    %v702 = vsub.f32 1.0, %v678
    %705 = vrot.lane.b32.xlu0 %v699, 96
    %v706 = vpop.permute.xlu0 %705
    %707 = vrot.lane.b32.xlu0 %v700, 96
    %v708 = vpop.permute.xlu0 %707
    %v711 = vmul.f32 %v701, %v706
    %v712 = vmul.f32 %v702, %v708
    %v713 = vmul.f32 %v676, %v578
    %v714 = vmul.f32 %v678, %v579
    %v715 = vadd.f32 %v711, %v713
    %v716 = vadd.f32 %v712, %v714
    %vm717 = vcmask 130048
    %v718 = vsel %vm717, %v46, 0.0
    %719 = vadd.xlane.f32.xlu0 %v718
    %v720 = vpop.xlane.xlu0 %719
    %723 = vrot.lane.b32.xlu0 %v715, 96
    %v724 = vpop.permute.xlu0 %723
    %725 = vrot.lane.b32.xlu0 %v716, 96
    %v726 = vpop.permute.xlu0 %725
    %v730 = vsel %vm717, %v46, 0
    %732 = vmatprep.subr.mxu0 0.0
    %733 = vmatpush1.msra.mxu0 0.0
    %734 = vmatprep.subr.mxu0 0.0
    %735 = vmatpush1.msra.mxu0 0.0
    %736 = vmatprep.subr.mxu0 0.0
    %737 = vmatpush1.msra.mxu0 0.0
    %738 = vmatprep.subr.mxu0 0.0
    %739 = vmatpush1.msra.mxu0 0.0
    %740 = vmatprep.subr.mxu0 0.0
    %741 = vmatpush1.msra.mxu0 0.0
    %742 = vmatprep.subr.mxu0 0.0
    %743 = vmatpush1.msra.mxu0 0.0
    %744 = vmatprep.subr.mxu0 0.0
    %745 = vmatpush1.msra.mxu0 0.0
    %746 = vmatprep.subr.mxu0 0.0
    %747 = vmatpush1.msra.mxu0 0.0
    %748 = vmatprep.subr.mxu0 0.0
    %749 = vmatpush1.msra.mxu0 0.0
    %750 = vmatprep.subr.mxu0 0.0
    %751 = vmatpush1.msra.mxu0 0.0
    %752 = vmatprep.subr.mxu0 0.0
    %753 = vmatpush1.msra.mxu0 0.0
    %754 = vmatprep.subr.mxu0 0.0
    %755 = vmatpush1.msra.mxu0 0.0
    %756 = vmatprep.subr.mxu0 0.0
    %757 = vmatpush1.msra.mxu0 0.0
    %758 = vmatprep.subr.mxu0 0.0
    %759 = vmatpush1.msra.mxu0 0.0
    %760 = vmatprep.subr.mxu0 0.0
    %761 = vmatpush1.msra.mxu0 %v726
    %762 = vmatprep.subr.mxu0 0.0
    %763 = vmatpush1.msra.mxu0 %v724
    %764 = vmatprep.subr.mxu0 0.0
    %765 = vmatpush2.msra.mxu0 0.0
    %766 = vmatprep.subr.mxu0 0.0
    %767 = vmatpush2.msra.mxu0 0.0
    %768 = vmatprep.subr.mxu0 0.0
    %769 = vmatpush2.msra.mxu0 0.0
    %770 = vmatprep.subr.mxu0 0.0
    %771 = vmatpush2.msra.mxu0 0.0
    %772 = vmatprep.subr.mxu0 0.0
    %773 = vmatpush2.msra.mxu0 0.0
    %774 = vmatprep.subr.mxu0 0.0
    %775 = vmatpush2.msra.mxu0 0.0
    %776 = vmatprep.subr.mxu0 0.0
    %777 = vmatpush2.msra.mxu0 0.0
    %778 = vmatprep.subr.mxu0 0.0
    %779 = vmatpush2.msra.mxu0 0.0
    %780 = vmatprep.subr.mxu0 0.0
    %781 = vmatpush2.msra.mxu0 0.0
    %782 = vmatprep.subr.mxu0 0.0
    %783 = vmatpush2.msra.mxu0 0.0
    %784 = vmatprep.subr.mxu0 0.0
    %785 = vmatpush2.msra.mxu0 0.0
    %786 = vmatprep.subr.mxu0 0.0
    %787 = vmatpush2.msra.mxu0 0.0
    %788 = vmatprep.subr.mxu0 0.0
    %789 = vmatpush2.msra.mxu0 0.0
    %790 = vmatprep.subr.mxu0 0.0
    %791 = vmatpush2.msra.mxu0 0.0
    %792 = vmatprep.subr.mxu0 0.0
    %793 = vmatpush2.msra.mxu0 0.0
    %794 = vmatprep.subr.mxu0 0.0
    %795 = vmatpush2.msra.mxu0 0.0
    %796 = vmatprep.mubr.f32.mxu0 0.0
    %797 = vmatmul.mubr.f32.gmra.mxu0 %v730
    %v798 = vpop.f32.mrf.mxu0
    %v799 = vadd.f32 0.0, %v798
    %v800 = vpop.f32.mrf.mxu0
    %801 = vdwg.mxu0
    %v802 = vmax.f32 %v720, 1.0
    %v803 = vrcp.pop %v802
    %v804 = vmul.f32 %v799, %v803
    %v805 = vlaneseq
    %v806 = vshrl.u32 %v805, 7
    %vm807 = vcmp.lt.s32.totalorder %v806, 2
    %v808 = vsel %vm807, 1, 0
    %v809 = vcvt.s32.f32 %v808
    %v810 = vmul.f32 %v804, %v809
    %v811 = vsel %vm311, %v810, 0.0
    %v812 = vrot.slane %v811, 4
    %v813 = vadd.f32 %v811, %v812
    %v814 = vrot.slane %v813, 2
    %v815 = vadd.f32 %v813, %v814
    %v816 = vrot.slane %v815, 1
    %v817 = vadd.f32 %v815, %v816
    %v818 = vmul.f32 %v817, 0.5
    %v819 = vsub.f32 %v804, %v818
    %v820 = vmul.f32 %v819, %v809
    %v821 = vmul.f32 %v820, %v820
    %v822 = vsel %vm311, %v821, 0.0
    %v823 = vrot.slane %v822, 4
    %v824 = vadd.f32 %v822, %v823
    %v825 = vrot.slane %v824, 2
    %v826 = vadd.f32 %v824, %v825
    %v827 = vrot.slane %v826, 1
    %v828 = vadd.f32 %v826, %v827
    %v829 = vmul.f32 %v828, 0.5
    %v830 = vadd.f32 %v829, 1e-05
    %v831 = vrsqrt.pop %v830
    %v832 = vmul.f32 %v819, %v831
    %v833 = vlaneseq
    %v834 = vshrl.u32 %v833, 7
    %v835 = vsub.s32 2, %v834
    %v836 = vrot.slane %v58, %v835
    %v837 = vmul.f32 %v832, %v836
    %v838 = vlaneseq
    %v839 = vshrl.u32 %v838, 7
    %v840 = vsub.s32 3, %v839
    %v841 = vrot.slane %v58, %v840
    %v842 = vadd.f32 %v837, %v841
    %v843 = vlaneseq
    %v844 = vshrl.u32 %v843, 7
    %v845 = vsub.s32 4, %v844
    %v846 = vrot.slane %v58, %v845
    %v848 = vsel %vm311, %v842, 0
    %850 = vmatprep.subr.mxu0 0.0
    %851 = vmatpush1.msra.mxu0 0.0
    %852 = vmatprep.subr.mxu0 0.0
    %853 = vmatpush1.msra.mxu0 0.0
    %854 = vmatprep.subr.mxu0 0.0
    %855 = vmatpush1.msra.mxu0 0.0
    %856 = vmatprep.subr.mxu0 0.0
    %857 = vmatpush1.msra.mxu0 0.0
    %858 = vmatprep.subr.mxu0 0.0
    %859 = vmatpush1.msra.mxu0 0.0
    %860 = vmatprep.subr.mxu0 0.0
    %861 = vmatpush1.msra.mxu0 0.0
    %862 = vmatprep.subr.mxu0 0.0
    %863 = vmatpush1.msra.mxu0 0.0
    %864 = vmatprep.subr.mxu0 0.0
    %865 = vmatpush1.msra.mxu0 0.0
    %866 = vmatprep.subr.mxu0 0.0
    %867 = vmatpush1.msra.mxu0 0.0
    %868 = vmatprep.subr.mxu0 0.0
    %869 = vmatpush1.msra.mxu0 0.0
    %870 = vmatprep.subr.mxu0 0.0
    %871 = vmatpush1.msra.mxu0 0.0
    %872 = vmatprep.subr.mxu0 0.0
    %873 = vmatpush1.msra.mxu0 0.0
    %874 = vmatprep.subr.mxu0 0.0
    %875 = vmatpush1.msra.mxu0 %v55
    %876 = vmatprep.subr.mxu0 0.0
    %877 = vmatpush1.msra.mxu0 %v54
    %878 = vmatprep.subr.mxu0 0.0
    %879 = vmatpush1.msra.mxu0 %v53
    %880 = vmatprep.subr.mxu0 0.0
    %881 = vmatpush1.msra.mxu0 %v52
    %882 = vmatprep.subr.mxu0 0.0
    %883 = vmatpush2.msra.mxu0 0.0
    %884 = vmatprep.subr.mxu0 0.0
    %885 = vmatpush2.msra.mxu0 0.0
    %886 = vmatprep.subr.mxu0 0.0
    %887 = vmatpush2.msra.mxu0 0.0
    %888 = vmatprep.subr.mxu0 0.0
    %889 = vmatpush2.msra.mxu0 0.0
    %890 = vmatprep.subr.mxu0 0.0
    %891 = vmatpush2.msra.mxu0 0.0
    %892 = vmatprep.subr.mxu0 0.0
    %893 = vmatpush2.msra.mxu0 0.0
    %894 = vmatprep.subr.mxu0 0.0
    %895 = vmatpush2.msra.mxu0 0.0
    %896 = vmatprep.subr.mxu0 0.0
    %897 = vmatpush2.msra.mxu0 0.0
    %898 = vmatprep.subr.mxu0 0.0
    %899 = vmatpush2.msra.mxu0 0.0
    %900 = vmatprep.subr.mxu0 0.0
    %901 = vmatpush2.msra.mxu0 0.0
    %902 = vmatprep.subr.mxu0 0.0
    %903 = vmatpush2.msra.mxu0 0.0
    %904 = vmatprep.subr.mxu0 0.0
    %905 = vmatpush2.msra.mxu0 0.0
    %906 = vmatprep.subr.mxu0 0.0
    %907 = vmatpush2.msra.mxu0 0.0
    %908 = vmatprep.subr.mxu0 0.0
    %909 = vmatpush2.msra.mxu0 0.0
    %910 = vmatprep.subr.mxu0 0.0
    %911 = vmatpush2.msra.mxu0 0.0
    %912 = vmatprep.subr.mxu0 0.0
    %913 = vmatpush2.msra.mxu0 0.0
    %914 = vmatprep.mubr.f32.mxu0 0.0
    %915 = vmatmul.mubr.f32.gmra.mxu0 %v848
    %v916 = vpop.f32.mrf.mxu0
    %v917 = vadd.f32 %v846, %v916
    %v918 = vpop.f32.mrf.mxu0
    %919 = vdwg.mxu0
    %v920 = vmax.f32 %v917, 0.0
    %v921 = vlaneseq
    %v922 = vshrl.u32 %v921, 7
    %v923 = vsub.s32 5, %v922
    %v924 = vrot.slane %v58, %v923
    %v926 = vsel %vm717, %v920, 0
    %928 = vmatprep.subr.mxu0 0.0
    %929 = vmatpush1.msra.mxu0 0.0
    %930 = vmatprep.subr.mxu0 0.0
    %931 = vmatpush1.msra.mxu0 0.0
    %932 = vmatprep.subr.mxu0 0.0
    %933 = vmatpush1.msra.mxu0 0.0
    %934 = vmatprep.subr.mxu0 0.0
    %935 = vmatpush1.msra.mxu0 0.0
    %936 = vmatprep.subr.mxu0 0.0
    %937 = vmatpush1.msra.mxu0 0.0
    %938 = vmatprep.subr.mxu0 0.0
    %939 = vmatpush1.msra.mxu0 0.0
    %940 = vmatprep.subr.mxu0 0.0
    %941 = vmatpush1.msra.mxu0 0.0
    %942 = vmatprep.subr.mxu0 0.0
    %943 = vmatpush1.msra.mxu0 0.0
    %944 = vmatprep.subr.mxu0 0.0
    %945 = vmatpush1.msra.mxu0 0.0
    %946 = vmatprep.subr.mxu0 0.0
    %947 = vmatpush1.msra.mxu0 0.0
    %948 = vmatprep.subr.mxu0 0.0
    %949 = vmatpush1.msra.mxu0 0.0
    %950 = vmatprep.subr.mxu0 0.0
    %951 = vmatpush1.msra.mxu0 0.0
    %952 = vmatprep.subr.mxu0 0.0
    %953 = vmatpush1.msra.mxu0 0.0
    %954 = vmatprep.subr.mxu0 0.0
    %955 = vmatpush1.msra.mxu0 0.0
    %956 = vmatprep.subr.mxu0 0.0
    %957 = vmatpush1.msra.mxu0 %v57
    %958 = vmatprep.subr.mxu0 0.0
    %959 = vmatpush1.msra.mxu0 %v56
    %960 = vmatprep.subr.mxu0 0.0
    %961 = vmatpush2.msra.mxu0 0.0
    %962 = vmatprep.subr.mxu0 0.0
    %963 = vmatpush2.msra.mxu0 0.0
    %964 = vmatprep.subr.mxu0 0.0
    %965 = vmatpush2.msra.mxu0 0.0
    %966 = vmatprep.subr.mxu0 0.0
    %967 = vmatpush2.msra.mxu0 0.0
    %968 = vmatprep.subr.mxu0 0.0
    %969 = vmatpush2.msra.mxu0 0.0
    %970 = vmatprep.subr.mxu0 0.0
    %971 = vmatpush2.msra.mxu0 0.0
    %972 = vmatprep.subr.mxu0 0.0
    %973 = vmatpush2.msra.mxu0 0.0
    %974 = vmatprep.subr.mxu0 0.0
    %975 = vmatpush2.msra.mxu0 0.0
    %976 = vmatprep.subr.mxu0 0.0
    %977 = vmatpush2.msra.mxu0 0.0
    %978 = vmatprep.subr.mxu0 0.0
    %979 = vmatpush2.msra.mxu0 0.0
    %980 = vmatprep.subr.mxu0 0.0
    %981 = vmatpush2.msra.mxu0 0.0
    %982 = vmatprep.subr.mxu0 0.0
    %983 = vmatpush2.msra.mxu0 0.0
    %984 = vmatprep.subr.mxu0 0.0
    %985 = vmatpush2.msra.mxu0 0.0
    %986 = vmatprep.subr.mxu0 0.0
    %987 = vmatpush2.msra.mxu0 0.0
    %988 = vmatprep.subr.mxu0 0.0
    %989 = vmatpush2.msra.mxu0 0.0
    %990 = vmatprep.subr.mxu0 0.0
    %991 = vmatpush2.msra.mxu0 0.0
    %992 = vmatprep.mubr.f32.mxu0 0.0
    %993 = vmatmul.mubr.f32.gmra.mxu0 %v926
    %v994 = vpop.f32.mrf.mxu0
    %v995 = vadd.f32 %v924, %v994
    %v996 = vpop.f32.mrf.mxu0
    %997 = vdwg.mxu0
    %vm998 = vcmask 23552
    %v999 = vsel %vm998, %v995, -inf
    %1000 = vmax.xlane.f32.xlu0 %v999
    %v1001 = vpop.xlane.xlu0 %1000
    %v1002 = vsub.f32 %v995, %v1001
    %v1003 = vmul.f32 %v1002, 1.442695
    %v1004 = vpow.pop %v1003
    %v1005 = vsel %vm998, %v1004, 0.0
    %1006 = vadd.xlane.f32.xlu0 %v1005
    %v1007 = vpop.xlane.xlu0 %1006
    %v1008 = vlog2.pop %v1007
    %v1009 = vmul.f32 %v1008, 0.6931472
    %v1010 = vadd.f32 %v1009, %v1001
    %v1011 = vsub.f32 %v995, %v1010
    %1012 = vst.msk [vmem:[%s5] sm:$0xff] %vm998, %v1011
    // Predicated region
    $region26: #{tpu_custom_call.1} parent=1 // pred_check
      _
    $region27: #{tpu_custom_call.1} parent=1 // pred_check_branch
      %1014 = sbr.rel (0) target = $region29
    $region28: #{tpu_custom_call.1} parent=1 // pred_region
      _
    $region29: #{tpu_custom_call.1} parent=1 // pred_fallthru
      _
    // Predicated region
    $region30: #{tpu_custom_call.1} parent=1 // pred_check
      _
    $region31: #{tpu_custom_call.1} parent=1 // pred_check_branch
      %1016 = sbr.rel (0) target = $region33
    $region32: #{tpu_custom_call.1} parent=1 // pred_region
      _
    $region33: #{tpu_custom_call.1} parent=1 // pred_fallthru
      _
    %1017 = vsyncpa [#allocation3], 1

</llo_original>
